<compile_context>
chip_gen: v7x
topology: tpu7x:2x2x1
jax: 0.10.0
libtpu: 0.0.40
codegen_flags: <defaults>
</compile_context>

<pallas_src>
import functools

import jax
import jax.numpy as jnp
from jax.experimental import pallas as pl
from jax.experimental.pallas import tpu as pltpu


def _convnet_kernel(x_ref, w_ref, o_ref, *, img_w, tk, kb):
    """One (batch-tile, feature-tile) grid step.

    x_ref : (TN, TK)   flat NCHW activations, TK = TR * 2 * img_w (lane-aligned)
    w_ref : (O,  CHW)  fused fc1@fc2 weight, VMEM-resident; column u is nonzero
                       only when u is the flat index of a 2x2-window top-left
                       corner (and then holds that pooled feature's weight)
    o_ref : (TN, O)    output block, resident across the reduction axis and
                       used directly as the f32 accumulator
    """
    k = pl.program_id(1)

    @pl.when(k == 0)
    def _init():
        o_ref[...] = jnp.zeros_like(o_ref)

    x = x_ref[...]                                            # (TN, TK)
    # 2x2 max-pool via two lane rotations (XLU slot, free alongside VPU/MXU):
    #   roll by TK-1  ==  roll by -1  -> neighbour u+1
    #   roll by TK-W  ==  roll by -W  -> neighbour u+W (and u+W+1 via m01)
    # Window corners never need wrapped lanes (each 2-row strip lies entirely
    # inside the tile); wrapped non-corner lanes meet zero weight columns.
    m01 = jnp.maximum(x, pltpu.roll(x, tk - 1, axis=1))
    m = jnp.maximum(m01, pltpu.roll(m01, tk - img_w, axis=1))
    m = jnp.maximum(m, 0.0)                                   # single ReLU after max

    if kb == 1:
        w_t = w_ref[...]                                      # (O, TK) == full weight
    else:
        start = pl.multiple_of(k * tk, 128)                   # tk % 128 == 0 here
        w_t = w_ref[:, pl.ds(start, tk)]                      # lane-aligned slice

    # Fused fc1+fc2 as one NT matmul (contract the lane axis of both operands).
    o_ref[...] += jax.lax.dot_general(
        m, w_t, (((1,), (1,)), ((), ())),
        preferred_element_type=jnp.float32)


def _round_up(a, m):
    return -(-a // m) * m


def _vmem_params():
    """Per-generation VMEM limit and per-buffer x-block budget."""
    cap = 64 * 1024 * 1024                       # conservative default (v7x-sized)
    try:
        info = pltpu.get_tpu_info()
        cap = int(getattr(info, "vmem_capacity_bytes", cap)) or cap
    except Exception:
        pass
    # v5e/v6e (128 MiB) -> 96 MiB limit, ~8 MiB x blocks;
    # v7x    (64 MiB)  -> 48 MiB limit, ~4 MiB x blocks.
    vmem_limit = min(cap * 3 // 4, 96 * 1024 * 1024)
    # Live set ~ 2x (double-buffered x) + ~3x (roll temporaries) + resident
    # weight, so keep each x block at ~limit/12.
    x_budget = max(1 * 1024 * 1024, vmem_limit // 12)
    return x_budget, vmem_limit


def _pick_tiles(padded_n, row_pairs, img_w, x_block_budget):
    """Choose (TN, TR): batch tile and 2-row pooling strips per reduction step.

    Returns TR=None when no divisor of row_pairs yields a 128-aligned tile
    (caller falls back to one zero-padded full-extent feature block)."""
    # Batch tile: multiple of 8 (the (8,128) rule), cap 256, and <= padded_n/2
    # so there are always >= 2 batch tiles (megacore sharding on v7x).
    tn = 8
    for cand in (256, 128, 64, 32, 16, 8):
        if padded_n % cand == 0 and cand <= padded_n // 2:
            tn = cand
            break
    per_pair = 2 * img_w                          # flat elements per 2-row strip
    budget_pairs = max(1, x_block_budget // (tn * per_pair * 4))
    for cand in range(min(row_pairs, budget_pairs), 0, -1):
        if row_pairs % cand == 0 and (cand * per_pair) % 128 == 0:
            return tn, cand
    return tn, None


def convnet_forward(x, fc1_w, fc1_b, fc2_w, fc2_b):
    """x: (N, C, H, W) f32 NCHW.  fc1_w: (32, F), fc1_b: (32,), fc2_w: (2, 32),
    fc2_b: (2,), with F = C*(H//2)*(W//2) (PyTorch Linear layout).
    Returns (N, 2) f32 == relu -> relu -> maxpool(2,2) -> flatten -> fc1 -> fc2."""
    n, c, h, w = x.shape
    assert h % 2 == 0 and w % 2 == 0, "MaxPool2d(2,2) expects even H, W"
    ph, pw = h // 2, w // 2
    feat = c * ph * pw
    row_pairs = c * ph                     # number of 2-row pooling strips
    chw = c * h * w
    hid, f_in = fc1_w.shape
    out_dim = fc2_w.shape[0]
    assert f_in == feat and fc2_w.shape[1] == hid

    # ---- weight preprocessing (weight-sized arrays only; done once) ---------
    # Fold fc2 into fc1:  y = p @ (W1^T W2^T) + (b1 W2^T + b2).  HIGHEST
    # precision here is a tiny one-off XLA matmul and removes folding error.
    hp = jax.lax.Precision.HIGHEST
    wf = jnp.matmul(fc1_w.T.astype(jnp.float32), fc2_w.T.astype(jnp.float32),
                    precision=hp)                                    # (F, O)
    bf = (jnp.matmul(fc1_b.astype(jnp.float32), fc2_w.T.astype(jnp.float32),
                     precision=hp)
          + fc2_b.astype(jnp.float32)).reshape(1, out_dim)
    # Expand onto the flat NCHW index space: row c*H*W + (2i)*W + (2j) (the
    # window's top-left corner) carries pooled feature (c, i, j)'s weight; all
    # other rows are zero.  Stored transposed -> lane-dense (O, C*H*W).
    wf4 = wf.reshape(c, ph, pw, out_dim)
    wexp = jnp.zeros((c, ph, 2, pw, 2, out_dim), jnp.float32)
    wexp = wexp.at[:, :, 0, :, 0, :].set(wf4)
    wexp_t = wexp.reshape(chw, out_dim).T                            # (O, C*H*W)

    # ---- tiling --------------------------------------------------------------
    x_budget, vmem_limit = _vmem_params()
    padded_n = max(_round_up(n, 8), 16)    # multiple of 8, and >= 2 batch tiles
    tn, tr = _pick_tiles(padded_n, row_pairs, w, x_budget)

    x_flat = x.reshape(n, chw).astype(jnp.float32)   # free row-major reshape
    if tr is not None:
        tk = tr * 2 * w
        kb = row_pairs // tr
        chw_pad = chw
    else:
        # Degenerate shapes: no row-pair divisor gives a 128-aligned tile.
        # Use one feature block, lane-padded to a multiple of 128 (pad lanes
        # carry zero activations and zero weights), and shrink TN for budget.
        chw_pad = _round_up(chw, 128)
        tk, kb = chw_pad, 1
        while tn > 8 and tn * tk * 4 > 2 * x_budget:
            tn //= 2
        x_flat = jnp.pad(x_flat, ((0, 0), (0, chw_pad - chw)))
        wexp_t = jnp.pad(wexp_t, ((0, 0), (0, chw_pad - chw)))
    nb = padded_n // tn

    if padded_n != n:
        x_flat = jnp.pad(x_flat, ((0, padded_n - n), (0, 0)))   # zero pad rows

    kernel = functools.partial(_convnet_kernel, img_w=w, tk=tk, kb=kb)

    out = pl.pallas_call(
        kernel,
        out_shape=jax.ShapeDtypeStruct((padded_n, out_dim), jnp.float32),
        grid_spec=pltpu.PrefetchScalarGridSpec(
            num_scalar_prefetch=0,
            grid=(nb, kb),
            in_specs=[
                pl.BlockSpec((tn, tk), lambda i, k: (i, k)),          # activations
                pl.BlockSpec((out_dim, chw_pad), lambda i, k: (0, 0)),  # resident weight
            ],
            out_specs=pl.BlockSpec((tn, out_dim), lambda i, k: (i, 0)),
        ),
        compiler_params=pltpu.CompilerParams(
            dimension_semantics=("parallel", "arbitrary"),
            vmem_limit_bytes=vmem_limit,
        ),
    )(x_flat, wexp_t)

    return out[:n] + bf                     # fused bias added once, in the wrapper


if __name__ == "__main__":
    # Small shapes consistent with the module's forward: (N, 3, 16, 16) ->
    # flatten F = 3*8*8 = 192, fc1 = Linear(192, 32), fc2 = Linear(32, 2).
    N, C, H, W = 2, 3, 16, 16
    F = C * (H // 2) * (W // 2)

    key = jax.random.PRNGKey(0)
    kx, k1, k2, k3, k4 = jax.random.split(key, 5)
    x = jax.random.normal(kx, (N, C, H, W), jnp.float32)

    # nn.Linear stores weight as (out_features, in_features); y = x @ W.T + b
    fc1_w = jax.random.normal(k1, (32, F), jnp.float32) * 0.02
    fc1_b = jax.random.normal(k2, (32,), jnp.float32) * 0.02
    fc2_w = jax.random.normal(k3, (2, 32), jnp.float32) * 0.02
    fc2_b = jax.random.normal(k4, (2,), jnp.float32) * 0.02

    out = jax.block_until_ready(convnet_forward(x, fc1_w, fc1_b, fc2_w, fc2_b))

    # Pure-JAX reference of the exact forward semantics.
    r = jnp.maximum(x, 0.0)                                       # relu (x2, idempotent)
    r = r.reshape(N, C, H // 2, 2, W // 2, 2).max(axis=(3, 5))    # MaxPool2d(2,2)
    r = r.reshape(N, -1)                                          # x.view(N, -1)
    ref = (r @ fc1_w.T + fc1_b) @ fc2_w.T + fc2_b                 # fc1 -> fc2

    assert out.shape == (N, 2)
    # Tolerance covers TPU default-precision (bf16-pass) MXU matmuls on both
    # paths; algorithmic errors would be ~10-100x larger than this bound.
    assert jnp.allclose(out, ref, atol=2e-3, rtol=1e-3), "mismatch vs reference"

    print("KERNEL_OK")
</pallas_src>

<mosaic_0001>
module attributes {stable_mosaic.version = 11 : i64} {
  func.func @_convnet_kernel(%arg0: i32, %arg1: i32, %arg2: memref<8x768xf32, #tpu.memory_space<vmem>>, %arg3: memref<2x768xf32, #tpu.memory_space<vmem>>, %arg4: memref<8x2xf32, #tpu.memory_space<vmem>>) attributes {dimension_semantics = [#tpu.dimension_semantics<parallel>, #tpu.dimension_semantics<arbitrary>], iteration_bounds = array<i64: 2, 1>, scalar_prefetch = 0 : i64, scratch_operands = 0 : i64, tpu.core_type = #tpu.core_type<tc>, window_params = [{transform_indices = @transform_0, window_bounds = array<i64: 8, 768>}, {pipeline_mode = #tpu.pipeline_mode<synchronous>, transform_indices = @transform_1, window_bounds = array<i64: 2, 768>}, {transform_indices = @transform_2, window_bounds = array<i64: 8, 2>}]} {
    %c0_i32 = arith.constant 0 : i32
    %0 = arith.cmpi eq, %arg1, %c0_i32 : i32
    %1 = arith.extui %0 : i1 to i32
    %c0_i32_0 = arith.constant 0 : i32
    %2 = arith.cmpi ne, %1, %c0_i32_0 : i32
    scf.if %2 {
      %cst_9 = arith.constant 0.000000e+00 : f32
      %15 = vector.broadcast %cst_9 : f32 to vector<8x2xf32>
      %c0_10 = arith.constant 0 : index
      %c0_11 = arith.constant 0 : index
      %16 = vector.load %arg4[%c0_10, %c0_11] : memref<8x2xf32, #tpu.memory_space<vmem>>, vector<8x2xf32>
      tpu.vector_store %arg4[%c0_10, %c0_11], %15 {strides = array<i32>} : memref<8x2xf32, #tpu.memory_space<vmem>>, vector<8x2xf32>,
    } else {
    }
    %c0 = arith.constant 0 : index
    %c0_1 = arith.constant 0 : index
    %3 = vector.load %arg2[%c0, %c0_1] : memref<8x768xf32, #tpu.memory_space<vmem>>, vector<8x768xf32>
    %c767_i32 = arith.constant 767 : i32
    %4 = tpu.dynamic_rotate %3 by %c767_i32 dim 1 : vector<8x768xf32>, i32 -> vector<8x768xf32>
    %5 = arith.maximumf %3, %4 : vector<8x768xf32>
    %c752_i32 = arith.constant 752 : i32
    %6 = tpu.dynamic_rotate %5 by %c752_i32 dim 1 : vector<8x768xf32>, i32 -> vector<8x768xf32>
    %7 = arith.maximumf %5, %6 : vector<8x768xf32>
    %cst = arith.constant 0.000000e+00 : f32
    %8 = vector.broadcast %cst : f32 to vector<8x768xf32>
    %9 = arith.maximumf %7, %8 : vector<8x768xf32>
    %c0_2 = arith.constant 0 : index
    %c0_3 = arith.constant 0 : index
    %10 = vector.load %arg3[%c0_2, %c0_3] : memref<2x768xf32, #tpu.memory_space<vmem>>, vector<2x768xf32>
    %c0_4 = arith.constant 0 : index
    %c0_5 = arith.constant 0 : index
    %11 = vector.load %arg4[%c0_4, %c0_5] : memref<8x2xf32, #tpu.memory_space<vmem>>, vector<8x2xf32>
    %cst_6 = arith.constant dense<0.000000e+00> : vector<8x2xf32>
    %12 = tpu.matmul %9, %10, %cst_6 {dimension_numbers = #tpu.dot_dimension_numbers<[1], [1], [0], [0], [0, 0, 1, 0], [], []>} : vector<8x768xf32>, vector<2x768xf32>, vector<8x2xf32> -> vector<8x2xf32>
    %13 = arith.addf %11, %12 : vector<8x2xf32>
    %c0_7 = arith.constant 0 : index
    %c0_8 = arith.constant 0 : index
    %14 = vector.load %arg4[%c0_7, %c0_8] : memref<8x2xf32, #tpu.memory_space<vmem>>, vector<8x2xf32>
    tpu.vector_store %arg4[%c0_7, %c0_8], %13 {strides = array<i32>} : memref<8x2xf32, #tpu.memory_space<vmem>>, vector<8x2xf32>,
    return
  }
  func.func @transform_0(%arg0: i32, %arg1: i32) -> (i32, i32) {
    %c0_i32 = arith.constant 0 : i32
    return %arg0, %arg1 : i32, i32
  }
  func.func @transform_1(%arg0: i32, %arg1: i32) -> (i32, i32) {
    %c0_i32 = arith.constant 0 : i32
    %c0_i32_0 = arith.constant 0 : i32
    %c0_i32_1 = arith.constant 0 : i32
    return %c0_i32, %c0_i32_0 : i32, i32
  }
  func.func @transform_2(%arg0: i32, %arg1: i32) -> (i32, i32) {
    %c0_i32 = arith.constant 0 : i32
    %c0_i32_0 = arith.constant 0 : i32
    return %arg0, %c0_i32 : i32, i32
  }
}

</mosaic_0001>

<llo_original>
// kernel: tpu_custom_call.1
$region0: #{tpu_custom_call.1}
  #allocation0 [shape = 'u32[]', space=smem, size = 0x4, offset = 0x4, fixed_abs, tag = 'smem constant byte address 0x4 - core index']
  #allocation1 [shape = 'u32[144,128]{1,0:T(1,128)}', space=vmem, size = 0x12000, scoped, tag = 'internal scratch']
  %s0 = inlined_call_operand.hbm [shape: f32[16,768], index: 0, kind: input, shape index: {}]
  %s1 = inlined_call_operand.hbm [shape: f32[2,768], index: 1, kind: input, shape index: {}]
  %s2 = inlined_call_operand.vmem [shape: f32[16,2], index: 2, kind: output, shape index: {}]
  %s3 = sld [smem:[#allocation0]]
  $region53: #{tpu_custom_call.1} parent=0
    _
  %s5 = ssub.s32 1, %s3
  %s6 = scalar_select 0, %s5, %s3
  $region1: #{tpu_custom_call.1} parent=0
    #allocation2 [shape = 'u8[49152]{0}', space=vmem, size = 0xc000, scoped, tag = 'input window, operand 0']
    #allocation3 [shape = 's32[2]{0}', space=sflag, size = 0x8, scoped, tag = 'scoped memory for tpu_custom_call.1']
    #allocation4 [shape = 'u8[6144]{0}', space=vmem, size = 0x1800, scoped, tag = 'input window, operand 1, single buffered']
    #allocation5 [shape = 's32[1]{0}', space=sflag, size = 0x4, scoped, tag = 'scoped memory for tpu_custom_call.1']
    %7 = vsyncpa [#allocation3], 0
    %s8 = scalar_lea.sflag [#allocation3], 1
    %9 = vsyncpa %s8, 0
    %10 = vsyncpa [#allocation5], 0
    loop: start=0, step=1, limit=4
    $region2: #{tpu_custom_call.1} parent=1 // loop_pre_header
      _
    $region3: #{tpu_custom_call.1} parent=1 // loop_header
      %s12 = sphi 0, %s16
      %p13 = scmp.ge.s32.totalorder %s12, 4
      %s19 = sphi 0, %s31
      %s20 = sphi 0, %s27
      %s21 = sphi 0, %s19
      %s22 = sphi 0, %s20
      %s23 = sphi 0, %s21
      %s24 = sphi 0, %s22
      %s36 = sphi 0, %s38
      %s39 = sphi 0, %s36
      %s40 = sphi 0, %s39
      %s56 = sphi 0, %s40
      %s60 = sphi 0, %s60
      %s62 = sphi 0, %s60
      %s63 = sphi 0, %s62
      %s77 = sphi 0, %s63
      %s83 = sphi 0, %s85
      %s86 = sphi 0, %s83
      %s87 = sphi 0, %s86
      %s103 = sphi 0, %s87
    $region4: #{tpu_custom_call.1} parent=1 // loop_header_branch
      %15 = sbr.rel (%p13) target = $region8
    $region5: #{tpu_custom_call.1} parent=1 // loop_body
      %s17 = ssub.s32 %s12, 1
      %s18 = ssub.s32 %s12, 2
      %s25 = sadd.s32 1, %s20
      %p26 = scmp.ge.s32.totalorder %s25, 1
      %s27 = scalar_select %p26, 0, %s25
      %s28 = sadd.s32 1, %s19
      %s29 = scalar_select %p26, %s28, %s19
      %p30 = scmp.ge.s32.totalorder %s29, 2
      %s31 = scalar_select %p30, 0, %s29
      %s32 = ssub.s32 %s19, %s31
      %s33 = ssub.s32 %s20, %s27
      %s34 = sor.u32 %s32, %s33
      %p35 = scmp.eq.s32.totalorder %s34, 0
      %s37 = sadd.s32 %s36, 1
      %s38 = scalar_select %p35, %s36, %s37
      %p41 = pneg %p35
      %p42 = scmp.eq.s32.totalorder %s12, 1
      %p43 = por %p41, %p42
      %p44 = scmp.ne.s32.totalorder %s36, %s39
      %p45 = scmp.eq.s32.totalorder %s12, 0
      %p46 = por %p44, %p45
      %p47 = scmp.ne.s32.totalorder %s36, %s39
      %p48 = scmp.eq.s32.totalorder %s17, 1
      %p49 = por %p47, %p48
      %p50 = scmp.ne.s32.totalorder %s39, %s40
      %p51 = scmp.eq.s32.totalorder %s17, 0
      %p52 = por %p50, %p51
      %p53 = scmp.ne.s32.totalorder %s39, %s40
      %p54 = scmp.eq.s32.totalorder %s18, 1
      %p55 = por %p53, %p54
      %p57 = scmp.ne.s32.totalorder %s40, %s56
      %p58 = scmp.eq.s32.totalorder %s18, 0
      %p59 = por %p57, %p58
      %s61 = sadd.s32 %s60, 1
      %p64 = scmp.eq.s32.totalorder %s12, 1
      %p65 = scmp.ne.s32.totalorder %s60, %s62
      %p66 = scmp.eq.s32.totalorder %s12, 0
      %p67 = por %p65, %p66
      %p68 = scmp.ne.s32.totalorder %s60, %s62
      %p69 = scmp.eq.s32.totalorder %s17, 1
      %p70 = por %p68, %p69
      %p71 = scmp.ne.s32.totalorder %s62, %s63
      %p72 = scmp.eq.s32.totalorder %s17, 0
      %p73 = por %p71, %p72
      %p74 = scmp.ne.s32.totalorder %s62, %s63
      %p75 = scmp.eq.s32.totalorder %s18, 1
      %p76 = por %p74, %p75
      %p78 = scmp.ne.s32.totalorder %s63, %s77
      %p79 = scmp.eq.s32.totalorder %s18, 0
      %p80 = por %p78, %p79
      %s81 = ssub.s32 %s19, %s31
      %p82 = scmp.eq.s32.totalorder %s81, 0
      %s84 = sadd.s32 %s83, 1
      %s85 = scalar_select %p82, %s83, %s84
      %p88 = pneg %p82
      %p89 = scmp.eq.s32.totalorder %s12, 1
      %p90 = por %p88, %p89
      %p91 = scmp.ne.s32.totalorder %s83, %s86
      %p92 = scmp.eq.s32.totalorder %s12, 0
      %p93 = por %p91, %p92
      %p94 = scmp.ne.s32.totalorder %s83, %s86
      %p95 = scmp.eq.s32.totalorder %s17, 1
      %p96 = por %p94, %p95
      %p97 = scmp.ne.s32.totalorder %s86, %s87
      %p98 = scmp.eq.s32.totalorder %s17, 0
      %p99 = por %p97, %p98
      %p100 = scmp.ne.s32.totalorder %s86, %s87
      %p101 = scmp.eq.s32.totalorder %s18, 1
      %p102 = por %p100, %p101
      %p104 = scmp.ne.s32.totalorder %s87, %s103
      %p105 = scmp.eq.s32.totalorder %s18, 0
      %p106 = por %p104, %p105
      %p107 = scmp.le.s32.totalorder 1, %s12
      %p108 = scmp.lt.s32.totalorder %s12, 3
      %p109 = pnand %p107, %p108
      %p110 = pneg %p109
      // Predicated region
      $region9: #{tpu_custom_call.1} parent=5 // pred_check
        _
      $region10: #{tpu_custom_call.1} parent=5 // pred_check_branch
        %112 = sbr.rel (%p109) target = $region12
      $region11: #{tpu_custom_call.1} parent=5 // pred_region
        %s113 = ssub.s32 %s12, 1
        // Predicated region
        $region13: #{tpu_custom_call.1} parent=11 // pred_check
          %p114 = pneg %p73
        $region14: #{tpu_custom_call.1} parent=11 // pred_check_branch
          %116 = sbr.rel (%p114) target = $region16
        $region15: #{tpu_custom_call.1} parent=11 // pred_region
          %s118 = ssub.s32 192, 192
          %119 = vsyncadd [#allocation5], %s118
          %s121 = sshll.u32 [#allocation4], 4
          %s122 = int_to_ptr.vmem [resolvable:$true] %s121
          %124 = dma.hbm_to_vmem [thread:$0]  %s1, 192, %s122, [#allocation5]
        $region16: #{tpu_custom_call.1} parent=11 // pred_fallthru
          _
      $region12: #{tpu_custom_call.1} parent=5 // pred_fallthru
        _
      %p125 = scmp.lt.s32.totalorder %s12, 2
      // Predicated region
      $region17: #{tpu_custom_call.1} parent=5 // pred_check
        %p126 = pneg %p125
      $region18: #{tpu_custom_call.1} parent=5 // pred_check_branch
        %128 = sbr.rel (%p126) target = $region20
      $region19: #{tpu_custom_call.1} parent=5 // pred_region
        // Predicated region
        $region21: #{tpu_custom_call.1} parent=19 // pred_check
          %p129 = pneg %p46
        $region22: #{tpu_custom_call.1} parent=19 // pred_check_branch
          %131 = sbr.rel (%p129) target = $region24
        $region23: #{tpu_custom_call.1} parent=19 // pred_region
          %s132 = sand.u32 %s36, 1
          %s133 = scalar_lea.sflag [#allocation3], %s132
          %s134 = sand.u32 %s36, 1
          %s135 = smul.addr %s134, 48
          %s136 = scalar_lea.vmem [#allocation2], %s135
          %s137 = smul.u32 6, %s20
          %s139 = ssub.s32 768, 768
          %140 = vsyncadd %s133, %s139
          %s141 = smul.addr %s19, 6
          %s142 = sadd.s32 %s137, %s141
          %s143 = smul.addr %s142, 128
          %s144 = scalar_lea.hbm %s0, %s143
          %s146 = sshll.u32 %s136, 4
          %s147 = int_to_ptr.vmem [resolvable:$true] %s146
          %149 = dma.hbm_to_vmem [thread:$0]  %s144, 768, %s147, %s133
        $region24: #{tpu_custom_call.1} parent=19 // pred_fallthru
          _
      $region20: #{tpu_custom_call.1} parent=5 // pred_fallthru
        _
      %p150 = scmp.le.s32.totalorder 1, %s12
      %p151 = scmp.lt.s32.totalorder %s12, 3
      %p152 = pnand %p150, %p151
      %p153 = pneg %p152
      // Predicated region
      $region25: #{tpu_custom_call.1} parent=5 // pred_check
        _
      $region26: #{tpu_custom_call.1} parent=5 // pred_check_branch
        %155 = sbr.rel (%p152) target = $region28
      $region27: #{tpu_custom_call.1} parent=5 // pred_region
        %s156 = ssub.s32 %s12, 1
        %s157 = sand.u32 %s39, 1
        %s158 = scalar_lea.sflag [#allocation3], %s157
        %s159 = sand.u32 %s39, 1
        %s160 = smul.addr %s159, 48
        %s161 = scalar_lea.vmem [#allocation2], %s160
        // Predicated region
        $region29: #{tpu_custom_call.1} parent=27 // pred_check
          %p162 = pneg %p52
        $region30: #{tpu_custom_call.1} parent=27 // pred_check_branch
          %164 = sbr.rel (%p162) target = $region32
        $region31: #{tpu_custom_call.1} parent=27 // pred_region
          %165 = dma.done %s158, 768
        $region32: #{tpu_custom_call.1} parent=27 // pred_fallthru
          _
        // Predicated region
        $region33: #{tpu_custom_call.1} parent=27 // pred_check
          %p166 = pneg %p73
        $region34: #{tpu_custom_call.1} parent=27 // pred_check_branch
          %168 = sbr.rel (%p166) target = $region36
        $region35: #{tpu_custom_call.1} parent=27 // pred_region
          %169 = dma.done [#allocation5], 192
        $region36: #{tpu_custom_call.1} parent=27 // pred_fallthru
          _
        %s170 = sand.u32 %s39, 1
        %s171 = scalar_lea.sflag [#allocation3], %s170
        %s172 = sand.u32 %s39, 1
        %s173 = smul.addr %s172, 48
        %s174 = scalar_lea.vmem [#allocation2], %s173
        %p175 = pneg %p52
        %p176 = pneg %p49
        %p177 = pneg %p73
        %p178 = pneg %p70
        %p179 = pneg %p99
        %p180 = pneg %p96
        %p181 = scmp.lt.s32.totalorder %s21, 1
        %s182 = scalar_select %p181, %s21, 1
        %s183 = smul.addr %s182, 8
        %s184 = scalar_lea.vmem %s2, %s183
        %s185 = smul.u32 6, %s22
        %p186 = scmp.lt.s32.totalorder %s21, 1
        %s187 = scalar_select %p186, %s21, 1
        %s188 = smul.addr %s187, 8
        %s189 = scalar_lea.vmem %s2, %s188
        %p190 = scmp.eq.s32.totalorder %s22, 0
        // Predicated region
        $region37: #{tpu_custom_call.1} parent=27 // pred_check
          %p191 = pneg %p190
        $region38: #{tpu_custom_call.1} parent=27 // pred_check_branch
          %193 = sbr.rel (%p191) target = $region40
        $region39: #{tpu_custom_call.1} parent=27 // pred_region
          %vm194 = vcmask 15360
          %195 = vst.msk [vmem:[%s189] sm:$0xff] %vm194, 0.0
        $region40: #{tpu_custom_call.1} parent=27 // pred_fallthru
          _
        %v196 = vld [vmem:[%s161] sm:$0xff]
        %v197 = vld [vmem:[%s161 + $0x8] sm:$0xff]
        %v198 = vld [vmem:[%s161 + $0x10] sm:$0xff]
        %v199 = vld [vmem:[%s161 + $0x18] sm:$0xff]
        %v200 = vld [vmem:[%s161 + $0x20] sm:$0xff]
        %v201 = vld [vmem:[%s161 + $0x28] sm:$0xff]
        %202 = vrot.lane.b32.xlu0 %v196, 127
        %v203 = vpop.permute.xlu0 %202
        %204 = vrot.lane.b32.xlu0 %v197, 127
        %v205 = vpop.permute.xlu0 %204
        %206 = vrot.lane.b32.xlu0 %v198, 127
        %v207 = vpop.permute.xlu0 %206
        %208 = vrot.lane.b32.xlu0 %v199, 127
        %v209 = vpop.permute.xlu0 %208
        %210 = vrot.lane.b32.xlu0 %v200, 127
        %v211 = vpop.permute.xlu0 %210
        %212 = vrot.lane.b32.xlu0 %v201, 127
        %v213 = vpop.permute.xlu0 %212
        %v214 = vlaneseq
        %v215 = vand.u32 %v214, 127
        %vm216 = vcmp.lt.s32.totalorder %v215, 127
        %v217 = vsel %vm216, %v211, %v213
        %v218 = vsel %vm216, %v209, %v211
        %v219 = vsel %vm216, %v207, %v209
        %v220 = vsel %vm216, %v205, %v207
        %v221 = vsel %vm216, %v203, %v205
        %v222 = vsel %vm216, %v213, %v203
        %v223 = vmax.f32 %v196, %v221
        %v224 = vmax.f32 %v197, %v220
        %v225 = vmax.f32 %v198, %v219
        %v226 = vmax.f32 %v199, %v218
        %v227 = vmax.f32 %v200, %v217
        %v228 = vmax.f32 %v201, %v222
        %229 = vrot.lane.b32.xlu0 %v223, 112
        %v230 = vpop.permute.xlu0 %229
        %231 = vrot.lane.b32.xlu0 %v224, 112
        %v232 = vpop.permute.xlu0 %231
        %233 = vrot.lane.b32.xlu0 %v225, 112
        %v234 = vpop.permute.xlu0 %233
        %235 = vrot.lane.b32.xlu0 %v226, 112
        %v236 = vpop.permute.xlu0 %235
        %237 = vrot.lane.b32.xlu0 %v227, 112
        %v238 = vpop.permute.xlu0 %237
        %239 = vrot.lane.b32.xlu0 %v228, 112
        %v240 = vpop.permute.xlu0 %239
        %vm241 = vcmp.lt.s32.totalorder %v215, 112
        %v242 = vsel %vm241, %v238, %v240
        %v243 = vsel %vm241, %v236, %v238
        %v244 = vsel %vm241, %v234, %v236
        %v245 = vsel %vm241, %v232, %v234
        %v246 = vsel %vm241, %v230, %v232
        %v247 = vsel %vm241, %v240, %v230
        %v248 = vmax.f32 %v223, %v246
        %v249 = vmax.f32 %v224, %v245
        %v250 = vmax.f32 %v225, %v244
        %v251 = vmax.f32 %v226, %v243
        %v252 = vmax.f32 %v227, %v242
        %v253 = vmax.f32 %v228, %v247
        %v254 = vmax.f32 %v248, 0.0
        %v255 = vmax.f32 %v249, 0.0
        %v256 = vmax.f32 %v250, 0.0
        %v257 = vmax.f32 %v251, 0.0
        %v258 = vmax.f32 %v252, 0.0
        %v259 = vmax.f32 %v253, 0.0
        %v260 = vld [vmem:[#allocation4] sm:$0xff]
        %v261 = vld [vmem:[#allocation4 + $0x8] sm:$0xf]
        %v262 = vld [vmem:[%s189] sm:$0xff]
        %v265 = vcombine.high %v260, %v260
        %v267 = vunpack.c.l.s4 1983009808
        %v268 = vunpack.c.0.s8 %v267
        %v269 = vlaneseq
        %v270 = vshrl.u32 %v269, 7
        %v271 = vsub.s32 %v268, %v270
        %v272 = vrot.slane %v260, %v271
        %v274 = vunpack.c.l.s4 1983009808
        %v275 = vunpack.c.0.s8 %v274
        %v276 = vlaneseq
        %v277 = vshrl.u32 %v276, 7
        %v278 = vsub.s32 %v275, %v277
        %v279 = vrot.slane %v265, %v278
        %v280 = vcombine.high %v272, %v272
        %v281 = vcombine.high %v279, %v279
        %v283 = vunpack.c.l.s4 1983009808
        %v284 = vunpack.c.0.s8 %v283
        %v285 = vlaneseq
        %v286 = vshrl.u32 %v285, 7
        %v287 = vsub.s32 %v284, %v286
        %v288 = vrot.slane %v261, %v287
        %v289 = vcombine.high %v288, %v288
        %296 = vmatprep.subr.mxu0 %v280
        %297 = vmatpush1.xpose.msra.mxu0 %v272
        %298 = vmatprep.subr.mxu0 0.0
        %299 = vmatpush1.xpose.msra.mxu0 0.0
        %300 = vmatprep.subr.mxu0 0.0
        %301 = vmatpush1.xpose.msra.mxu0 0.0
        %302 = vmatprep.subr.mxu0 0.0
        %303 = vmatpush1.xpose.msra.mxu0 0.0
        %304 = vmatprep.subr.mxu0 0.0
        %305 = vmatpush1.xpose.msra.mxu0 0.0
        %306 = vmatprep.subr.mxu0 0.0
        %307 = vmatpush1.xpose.msra.mxu0 0.0
        %308 = vmatprep.subr.mxu0 0.0
        %309 = vmatpush1.xpose.msra.mxu0 0.0
        %310 = vmatprep.subr.mxu0 0.0
        %311 = vmatpush1.xpose.msra.mxu0 0.0
        %312 = vmatprep.subr.mxu0 0.0
        %313 = vmatpush1.xpose.msra.mxu0 0.0
        %314 = vmatprep.subr.mxu0 0.0
        %315 = vmatpush1.xpose.msra.mxu0 0.0
        %316 = vmatprep.subr.mxu0 0.0
        %317 = vmatpush1.xpose.msra.mxu0 0.0
        %318 = vmatprep.subr.mxu0 0.0
        %319 = vmatpush1.xpose.msra.mxu0 0.0
        %320 = vmatprep.subr.mxu0 0.0
        %321 = vmatpush1.xpose.msra.mxu0 0.0
        %322 = vmatprep.subr.mxu0 0.0
        %323 = vmatpush1.xpose.msra.mxu0 0.0
        %324 = vmatprep.subr.mxu0 0.0
        %325 = vmatpush1.xpose.msra.mxu0 0.0
        %326 = vmatprep.subr.mxu0 0.0
        %327 = vmatpush1.xpose.msra.mxu0 0.0
        %328 = vmatprep.subr.mxu0 0.0
        %329 = vmatpush1.xpose.msra.mxu0 0.0
        %330 = vmatprep.subr.mxu0 0.0
        %331 = vmatpush1.xpose.msra.mxu0 0.0
        %332 = vmatprep.subr.mxu0 0.0
        %333 = vmatpush1.xpose.msra.mxu0 0.0
        %334 = vmatprep.subr.mxu0 0.0
        %335 = vmatpush1.xpose.msra.mxu0 0.0
        %336 = vmatprep.subr.mxu0 0.0
        %337 = vmatpush1.xpose.msra.mxu0 0.0
        %338 = vmatprep.subr.mxu0 0.0
        %339 = vmatpush1.xpose.msra.mxu0 0.0
        %340 = vmatprep.subr.mxu0 0.0
        %341 = vmatpush1.xpose.msra.mxu0 0.0
        %342 = vmatprep.subr.mxu0 0.0
        %343 = vmatpush1.xpose.msra.mxu0 0.0
        %344 = vmatprep.subr.mxu0 0.0
        %345 = vmatpush1.xpose.msra.mxu0 0.0
        %346 = vmatprep.subr.mxu0 0.0
        %347 = vmatpush1.xpose.msra.mxu0 0.0
        %348 = vmatprep.subr.mxu0 0.0
        %349 = vmatpush1.xpose.msra.mxu0 0.0
        %350 = vmatprep.subr.mxu0 0.0
        %351 = vmatpush1.xpose.msra.mxu0 0.0
        %352 = vmatprep.subr.mxu0 0.0
        %353 = vmatpush1.xpose.msra.mxu0 0.0
        %354 = vmatprep.subr.mxu0 0.0
        %355 = vmatpush1.xpose.msra.mxu0 0.0
        %356 = vmatprep.subr.mxu0 0.0
        %357 = vmatpush1.xpose.msra.mxu0 0.0
        %358 = vmatprep.subr.mxu0 0.0
        %359 = vmatpush1.xpose.msra.mxu0 0.0
        %360 = vmatprep.mubr.f32.mxu0 %v255
        %361 = vmatmul.mubr.f32.gmra.mrb[0].mxu0 %v254
        %v362 = vpop.f32.mrb[0].mxu0
        %v363 = vadd.f32 0.0, %v362
        %v364 = vpop.f32.mrb[0].mxu0
        %365 = vdwg.mxu0
        %366 = vmatprep.subr.mxu0 %v281
        %367 = vmatpush1.xpose.msra.mxu0 %v279
        %368 = vmatprep.subr.mxu0 0.0
        %369 = vmatpush1.xpose.msra.mxu0 0.0
        %370 = vmatprep.subr.mxu0 0.0
        %371 = vmatpush1.xpose.msra.mxu0 0.0
        %372 = vmatprep.subr.mxu0 0.0
        %373 = vmatpush1.xpose.msra.mxu0 0.0
        %374 = vmatprep.subr.mxu0 0.0
        %375 = vmatpush1.xpose.msra.mxu0 0.0
        %376 = vmatprep.subr.mxu0 0.0
        %377 = vmatpush1.xpose.msra.mxu0 0.0
        %378 = vmatprep.subr.mxu0 0.0
        %379 = vmatpush1.xpose.msra.mxu0 0.0
        %380 = vmatprep.subr.mxu0 0.0
        %381 = vmatpush1.xpose.msra.mxu0 0.0
        %382 = vmatprep.subr.mxu0 0.0
        %383 = vmatpush1.xpose.msra.mxu0 0.0
        %384 = vmatprep.subr.mxu0 0.0
        %385 = vmatpush1.xpose.msra.mxu0 0.0
        %386 = vmatprep.subr.mxu0 0.0
        %387 = vmatpush1.xpose.msra.mxu0 0.0
        %388 = vmatprep.subr.mxu0 0.0
        %389 = vmatpush1.xpose.msra.mxu0 0.0
        %390 = vmatprep.subr.mxu0 0.0
        %391 = vmatpush1.xpose.msra.mxu0 0.0
        %392 = vmatprep.subr.mxu0 0.0
        %393 = vmatpush1.xpose.msra.mxu0 0.0
        %394 = vmatprep.subr.mxu0 0.0
        %395 = vmatpush1.xpose.msra.mxu0 0.0
        %396 = vmatprep.subr.mxu0 0.0
        %397 = vmatpush1.xpose.msra.mxu0 0.0
        %398 = vmatprep.subr.mxu0 0.0
        %399 = vmatpush1.xpose.msra.mxu0 0.0
        %400 = vmatprep.subr.mxu0 0.0
        %401 = vmatpush1.xpose.msra.mxu0 0.0
        %402 = vmatprep.subr.mxu0 0.0
        %403 = vmatpush1.xpose.msra.mxu0 0.0
        %404 = vmatprep.subr.mxu0 0.0
        %405 = vmatpush1.xpose.msra.mxu0 0.0
        %406 = vmatprep.subr.mxu0 0.0
        %407 = vmatpush1.xpose.msra.mxu0 0.0
        %408 = vmatprep.subr.mxu0 0.0
        %409 = vmatpush1.xpose.msra.mxu0 0.0
        %410 = vmatprep.subr.mxu0 0.0
        %411 = vmatpush1.xpose.msra.mxu0 0.0
        %412 = vmatprep.subr.mxu0 0.0
        %413 = vmatpush1.xpose.msra.mxu0 0.0
        %414 = vmatprep.subr.mxu0 0.0
        %415 = vmatpush1.xpose.msra.mxu0 0.0
        %416 = vmatprep.subr.mxu0 0.0
        %417 = vmatpush1.xpose.msra.mxu0 0.0
        %418 = vmatprep.subr.mxu0 0.0
        %419 = vmatpush1.xpose.msra.mxu0 0.0
        %420 = vmatprep.subr.mxu0 0.0
        %421 = vmatpush1.xpose.msra.mxu0 0.0
        %422 = vmatprep.subr.mxu0 0.0
        %423 = vmatpush1.xpose.msra.mxu0 0.0
        %424 = vmatprep.subr.mxu0 0.0
        %425 = vmatpush1.xpose.msra.mxu0 0.0
        %426 = vmatprep.subr.mxu0 0.0
        %427 = vmatpush1.xpose.msra.mxu0 0.0
        %428 = vmatprep.subr.mxu0 0.0
        %429 = vmatpush1.xpose.msra.mxu0 0.0
        %430 = vmatprep.mubr.f32.mxu0 %v257
        %431 = vmatmul.mubr.f32.gmra.mrb[0].mxu0 %v256
        %v432 = vpop.f32.mrb[0].mxu0
        %v433 = vadd.f32 %v363, %v432
        %v434 = vpop.f32.mrb[0].mxu0
        %435 = vdwg.mxu0
        %436 = vmatprep.subr.mxu0 %v289
        %437 = vmatpush1.xpose.msra.mxu0 %v288
        %438 = vmatprep.subr.mxu0 0.0
        %439 = vmatpush1.xpose.msra.mxu0 0.0
        %440 = vmatprep.subr.mxu0 0.0
        %441 = vmatpush1.xpose.msra.mxu0 0.0
        %442 = vmatprep.subr.mxu0 0.0
        %443 = vmatpush1.xpose.msra.mxu0 0.0
        %444 = vmatprep.subr.mxu0 0.0
        %445 = vmatpush1.xpose.msra.mxu0 0.0
        %446 = vmatprep.subr.mxu0 0.0
        %447 = vmatpush1.xpose.msra.mxu0 0.0
        %448 = vmatprep.subr.mxu0 0.0
        %449 = vmatpush1.xpose.msra.mxu0 0.0
        %450 = vmatprep.subr.mxu0 0.0
        %451 = vmatpush1.xpose.msra.mxu0 0.0
        %452 = vmatprep.subr.mxu0 0.0
        %453 = vmatpush1.xpose.msra.mxu0 0.0
        %454 = vmatprep.subr.mxu0 0.0
        %455 = vmatpush1.xpose.msra.mxu0 0.0
        %456 = vmatprep.subr.mxu0 0.0
        %457 = vmatpush1.xpose.msra.mxu0 0.0
        %458 = vmatprep.subr.mxu0 0.0
        %459 = vmatpush1.xpose.msra.mxu0 0.0
        %460 = vmatprep.subr.mxu0 0.0
        %461 = vmatpush1.xpose.msra.mxu0 0.0
        %462 = vmatprep.subr.mxu0 0.0
        %463 = vmatpush1.xpose.msra.mxu0 0.0
        %464 = vmatprep.subr.mxu0 0.0
        %465 = vmatpush1.xpose.msra.mxu0 0.0
        %466 = vmatprep.subr.mxu0 0.0
        %467 = vmatpush1.xpose.msra.mxu0 0.0
        %468 = vmatprep.subr.mxu0 0.0
        %469 = vmatpush1.xpose.msra.mxu0 0.0
        %470 = vmatprep.subr.mxu0 0.0
        %471 = vmatpush1.xpose.msra.mxu0 0.0
        %472 = vmatprep.subr.mxu0 0.0
        %473 = vmatpush1.xpose.msra.mxu0 0.0
        %474 = vmatprep.subr.mxu0 0.0
        %475 = vmatpush1.xpose.msra.mxu0 0.0
        %476 = vmatprep.subr.mxu0 0.0
        %477 = vmatpush1.xpose.msra.mxu0 0.0
        %478 = vmatprep.subr.mxu0 0.0
        %479 = vmatpush1.xpose.msra.mxu0 0.0
        %480 = vmatprep.subr.mxu0 0.0
        %481 = vmatpush1.xpose.msra.mxu0 0.0
        %482 = vmatprep.subr.mxu0 0.0
        %483 = vmatpush1.xpose.msra.mxu0 0.0
        %484 = vmatprep.subr.mxu0 0.0
        %485 = vmatpush1.xpose.msra.mxu0 0.0
        %486 = vmatprep.subr.mxu0 0.0
        %487 = vmatpush1.xpose.msra.mxu0 0.0
        %488 = vmatprep.subr.mxu0 0.0
        %489 = vmatpush1.xpose.msra.mxu0 0.0
        %490 = vmatprep.subr.mxu0 0.0
        %491 = vmatpush1.xpose.msra.mxu0 0.0
        %492 = vmatprep.subr.mxu0 0.0
        %493 = vmatpush1.xpose.msra.mxu0 0.0
        %494 = vmatprep.subr.mxu0 0.0
        %495 = vmatpush1.xpose.msra.mxu0 0.0
        %496 = vmatprep.subr.mxu0 0.0
        %497 = vmatpush1.xpose.msra.mxu0 0.0
        %498 = vmatprep.subr.mxu0 0.0
        %499 = vmatpush1.xpose.msra.mxu0 0.0
        %500 = vmatprep.mubr.f32.mxu0 %v259
        %501 = vmatmul.mubr.f32.gmra.mrb[0].mxu0 %v258
        %v502 = vpop.f32.mrb[0].mxu0
        %v503 = vadd.f32 %v433, %v502
        %v504 = vpop.f32.mrb[0].mxu0
        %505 = vdwg.mxu0
        %v506 = vadd.f32 %v262, %v503
        %vm507 = vcmask 15360
        %508 = vst.msk [vmem:[%s189] sm:$0xff] %vm507, %v506
        %p509 = scmp.lt.s32.totalorder %s21, 1
        %s510 = scalar_select %p509, %s21, 1
        %s511 = smul.addr %s510, 8
        %s512 = scalar_lea.vmem %s2, %s511
        // Predicated region
        $region41: #{tpu_custom_call.1} parent=27 // pred_check
          %p513 = pneg %p96
        $region42: #{tpu_custom_call.1} parent=27 // pred_check_branch
          %515 = sbr.rel (%p513) target = $region44
        $region43: #{tpu_custom_call.1} parent=27 // pred_region
          _
        $region44: #{tpu_custom_call.1} parent=27 // pred_fallthru
          _
      $region28: #{tpu_custom_call.1} parent=5 // pred_fallthru
        _
      %p516 = scmp.le.s32.totalorder 2, %s12
      // Predicated region
      $region45: #{tpu_custom_call.1} parent=5 // pred_check
        %p517 = pneg %p516
      $region46: #{tpu_custom_call.1} parent=5 // pred_check_branch
        %519 = sbr.rel (%p517) target = $region48
      $region47: #{tpu_custom_call.1} parent=5 // pred_region
        %s520 = ssub.s32 %s12, 2
        // Predicated region
        $region49: #{tpu_custom_call.1} parent=47 // pred_check
          %p521 = pneg %p102
        $region50: #{tpu_custom_call.1} parent=47 // pred_check_branch
          %523 = sbr.rel (%p521) target = $region52
        $region51: #{tpu_custom_call.1} parent=47 // pred_region
          %p524 = scmp.lt.s32.totalorder %s23, 1
          %s525 = scalar_select %p524, %s23, 1
          %s526 = smul.addr %s525, 8
          %s527 = scalar_lea.vmem %s2, %s526
        $region52: #{tpu_custom_call.1} parent=47 // pred_fallthru
          _
      $region48: #{tpu_custom_call.1} parent=5 // pred_fallthru
        _
    $region6: #{tpu_custom_call.1} parent=1 // loop_footer
      %s16 = sadd.s32 1, %s12
    $region7: #{tpu_custom_call.1} parent=1 // loop_footer_branch
      %11 = sbr.rel target = $region3
    $region8: #{tpu_custom_call.1} parent=1 // loop_exit
      _
    %528 = vsyncpa [#allocation3], 1
    %s529 = scalar_lea.sflag [#allocation3], 1
    %530 = vsyncpa %s529, 1
    %531 = vsyncpa [#allocation5], 1

</llo_original>
